<compile_context>
chip_gen: v6e
topology: v6e:2x2x1
jax: 0.10.0
libtpu: 0.0.40
codegen_flags: <defaults>
</compile_context>

<pallas_src>
import functools

import jax
import jax.numpy as jnp
from jax.experimental import pallas as pl
from jax.experimental.pallas import tpu as pltpu

LANES = 128
MAX_TILE_ROWS = 2048   # (2048,128) f32 block = 1 MiB; 3 in x 2 bufs + 3 scratch ~ 9 MiB VMEM
NCORES = 2             # uses both TCs on v7x; harmless sequential split on v5e/v6e


def _l2_sums_kernel(pred_ref, gt_ref, mask_ref, out_ref,
                    sse_acc, m_acc, c_acc,
                    *, block_rows, steps_per_core, rows, need_mask):
    i = pl.program_id(1)

    @pl.when(i == 0)
    def _():
        sse_acc[...] = jnp.zeros_like(sse_acc)
        m_acc[...] = jnp.zeros_like(m_acc)
        c_acc[...] = jnp.zeros_like(c_acc)

    p = pred_ref[...].astype(jnp.float32)
    g = gt_ref[...].astype(jnp.float32)
    m = mask_ref[...].astype(jnp.float32)

    d = p - g
    dd = d * d

    if need_mask:  # static: only emitted when blocks can over-cover the array
        lb = pl.program_id(0) * steps_per_core + i          # logical block idx
        row0 = lb * block_rows
        local = jax.lax.broadcasted_iota(jnp.int32, (block_rows, LANES), 0)
        valid = (row0 + local) < rows
        dd = jnp.where(valid, dd, 0.0)
        m = jnp.where(valid, m, 0.0)

    # pure VPU elementwise accumulation (no per-step XLU reductions)
    sse_acc[...] += dd
    m_acc[...] += m
    c_acc[...] += (m > 0).astype(jnp.float32)

    @pl.when(i == pl.num_programs(1) - 1)
    def _():
        out_ref[0:1, :] = jnp.sum(sse_acc[...], axis=0, keepdims=True)
        out_ref[1:2, :] = jnp.sum(m_acc[...], axis=0, keepdims=True)
        out_ref[2:3, :] = jnp.sum(c_acc[...], axis=0, keepdims=True)


def _as_lane_slab(x):
    """Flatten to (rows, 128) keeping the native dtype.

    Only a <128-element tail is padded (rare); no full-array copy or cast.
    """
    flat = x.reshape(-1)
    n = flat.shape[0]
    pad = (-n) % LANES
    if pad:  # zero pad is neutral for all three sums
        flat = jnp.pad(flat, (0, pad))
    return flat.reshape(-1, LANES)


def l2_loss(pred, gt, mask):
    """Pallas-backed equivalent of L2Loss.forward(pred, gt, mask)."""
    numel = pred.size  # numel of pred for the MSE 'mean'

    p2 = _as_lane_slab(pred)
    g2 = _as_lane_slab(gt)
    m2 = _as_lane_slab(mask)
    rows = p2.shape[0]

    block_rows = min(MAX_TILE_ROWS, ((rows + 7) // 8) * 8)
    total_blocks = -(-rows // block_rows)
    steps_per_core = -(-total_blocks // NCORES)
    need_mask = (NCORES * steps_per_core * block_rows) != rows

    def in_map(c, i):
        # Clamp so the DMA never walks past the array; over-covered blocks are
        # fully masked out inside the kernel.
        return (jnp.minimum(c * steps_per_core + i, total_blocks - 1), 0)

    in_spec = pl.BlockSpec((block_rows, LANES), in_map)
    out_spec = pl.BlockSpec((None, 3, LANES), lambda c, i: (c, 0, 0))

    kernel = functools.partial(
        _l2_sums_kernel,
        block_rows=block_rows,
        steps_per_core=steps_per_core,
        rows=rows,
        need_mask=need_mask,
    )

    out = pl.pallas_call(
        kernel,
        out_shape=jax.ShapeDtypeStruct((NCORES, 3, LANES), jnp.float32),
        grid_spec=pltpu.PrefetchScalarGridSpec(
            num_scalar_prefetch=0,
            grid=(NCORES, steps_per_core),
            in_specs=[in_spec, in_spec, in_spec],
            out_specs=out_spec,
            scratch_shapes=[pltpu.VMEM((block_rows, LANES), jnp.float32)] * 3,
        ),
        compiler_params=pltpu.CompilerParams(
            dimension_semantics=("parallel", "arbitrary")),
    )(p2, g2, m2)

    sums = jnp.sum(out, axis=(0, 2))   # (3,) = [sse, sum(mask), count(mask > 0)]
    mse = sums[0] / jnp.float32(numel)
    # NOTE: cnt == 0 yields inf/NaN, matching the PyTorch divide-by-zero behavior.
    return mse * sums[1] / sums[2]


if __name__ == "__main__":
    key = jax.random.PRNGKey(0)
    k1, k2, k3 = jax.random.split(key, 3)

    # small NCHW shapes consistent with a dense prediction loss
    shape = (2, 4, 16, 16)
    pred = jax.random.normal(k1, shape, dtype=jnp.float32)
    gt = jax.random.normal(k2, shape, dtype=jnp.float32)
    mask = (jax.random.uniform(k3, shape) > 0.5).astype(jnp.float32)

    loss = jax.block_until_ready(l2_loss(pred, gt, mask))

    # pure-JAX reference check
    ref = jnp.mean((pred - gt) ** 2) * jnp.sum(mask) / jnp.sum(
        (mask > 0).astype(jnp.float32))
    assert jnp.allclose(loss, ref, rtol=1e-5, atol=1e-6), (loss, ref)

    print("KERNEL_OK")
</pallas_src>

<mosaic_0001>
module attributes {stable_mosaic.version = 11 : i64} {
  func.func @_l2_sums_kernel(%arg0: i32, %arg1: i32, %arg2: memref<16x128xf32, #tpu.memory_space<vmem>>, %arg3: memref<16x128xf32, #tpu.memory_space<vmem>>, %arg4: memref<16x128xf32, #tpu.memory_space<vmem>>, %arg5: memref<1x3x128xf32, #tpu.memory_space<vmem>>, %arg6: memref<16x128xf32, #tpu.memory_space<vmem>>, %arg7: memref<16x128xf32, #tpu.memory_space<vmem>>, %arg8: memref<16x128xf32, #tpu.memory_space<vmem>>) attributes {dimension_semantics = [#tpu.dimension_semantics<parallel>, #tpu.dimension_semantics<arbitrary>], iteration_bounds = array<i64: 2, 1>, scalar_prefetch = 0 : i64, scratch_operands = 3 : i64, tpu.core_type = #tpu.core_type<tc>, window_params = [{transform_indices = @transform_0, window_bounds = array<i64: 16, 128>}, {transform_indices = @transform_1, window_bounds = array<i64: 16, 128>}, {transform_indices = @transform_2, window_bounds = array<i64: 16, 128>}, {transform_indices = @transform_3, window_bounds = array<i64: 1, 3, 128>}]} {
    %c0_i32 = arith.constant 0 : i32
    %0 = arith.cmpi eq, %arg1, %c0_i32 : i32
    %1 = arith.extui %0 : i1 to i32
    %c0_i32_0 = arith.constant 0 : i32
    %2 = arith.cmpi ne, %1, %c0_i32_0 : i32
    scf.if %2 {
      %cst_23 = arith.constant 0.000000e+00 : f32
      %36 = vector.broadcast %cst_23 : f32 to vector<16x128xf32>
      %c0_24 = arith.constant 0 : index
      %c0_25 = arith.constant 0 : index
      %37 = vector.load %arg6[%c0_24, %c0_25] : memref<16x128xf32, #tpu.memory_space<vmem>>, vector<16x128xf32>
      tpu.vector_store %arg6[%c0_24, %c0_25], %36 {strides = array<i32>} : memref<16x128xf32, #tpu.memory_space<vmem>>, vector<16x128xf32>,
      %cst_26 = arith.constant 0.000000e+00 : f32
      %38 = vector.broadcast %cst_26 : f32 to vector<16x128xf32>
      %c0_27 = arith.constant 0 : index
      %c0_28 = arith.constant 0 : index
      %39 = vector.load %arg7[%c0_27, %c0_28] : memref<16x128xf32, #tpu.memory_space<vmem>>, vector<16x128xf32>
      tpu.vector_store %arg7[%c0_27, %c0_28], %38 {strides = array<i32>} : memref<16x128xf32, #tpu.memory_space<vmem>>, vector<16x128xf32>,
      %cst_29 = arith.constant 0.000000e+00 : f32
      %40 = vector.broadcast %cst_29 : f32 to vector<16x128xf32>
      %c0_30 = arith.constant 0 : index
      %c0_31 = arith.constant 0 : index
      %41 = vector.load %arg8[%c0_30, %c0_31] : memref<16x128xf32, #tpu.memory_space<vmem>>, vector<16x128xf32>
      tpu.vector_store %arg8[%c0_30, %c0_31], %40 {strides = array<i32>} : memref<16x128xf32, #tpu.memory_space<vmem>>, vector<16x128xf32>,
    } else {
    }
    %c0 = arith.constant 0 : index
    %c0_1 = arith.constant 0 : index
    %3 = vector.load %arg2[%c0, %c0_1] : memref<16x128xf32, #tpu.memory_space<vmem>>, vector<16x128xf32>
    %c0_2 = arith.constant 0 : index
    %c0_3 = arith.constant 0 : index
    %4 = vector.load %arg3[%c0_2, %c0_3] : memref<16x128xf32, #tpu.memory_space<vmem>>, vector<16x128xf32>
    %c0_4 = arith.constant 0 : index
    %c0_5 = arith.constant 0 : index
    %5 = vector.load %arg4[%c0_4, %c0_5] : memref<16x128xf32, #tpu.memory_space<vmem>>, vector<16x128xf32>
    %6 = arith.subf %3, %4 : vector<16x128xf32>
    %7 = arith.mulf %6, %6 : vector<16x128xf32>
    %c1_i32 = arith.constant 1 : i32
    %8 = arith.muli %arg0, %c1_i32 : i32
    %9 = arith.addi %8, %arg1 : i32
    %c16_i32 = arith.constant 16 : i32
    %10 = arith.muli %9, %c16_i32 : i32
    %11 = tpu.iota {dimensions = array<i32: 0>} : vector<16x128xi32>
    %12 = vector.broadcast %10 : i32 to vector<16x128xi32>
    %13 = arith.addi %12, %11 : vector<16x128xi32>
    %c16_i32_6 = arith.constant 16 : i32
    %14 = vector.broadcast %c16_i32_6 : i32 to vector<16x128xi32>
    %15 = arith.cmpi slt, %13, %14 : vector<16x128xi32>
    %cst = arith.constant 0.000000e+00 : f32
    %16 = vector.broadcast %cst : f32 to vector<16x128xf32>
    %17 = arith.select %15, %7, %16 : vector<16x128xi1>, vector<16x128xf32>
    %cst_7 = arith.constant 0.000000e+00 : f32
    %18 = vector.broadcast %cst_7 : f32 to vector<16x128xf32>
    %19 = arith.select %15, %5, %18 : vector<16x128xi1>, vector<16x128xf32>
    %c0_8 = arith.constant 0 : index
    %c0_9 = arith.constant 0 : index
    %20 = vector.load %arg6[%c0_8, %c0_9] : memref<16x128xf32, #tpu.memory_space<vmem>>, vector<16x128xf32>
    %21 = arith.addf %20, %17 : vector<16x128xf32>
    %c0_10 = arith.constant 0 : index
    %c0_11 = arith.constant 0 : index
    %22 = vector.load %arg6[%c0_10, %c0_11] : memref<16x128xf32, #tpu.memory_space<vmem>>, vector<16x128xf32>
    tpu.vector_store %arg6[%c0_10, %c0_11], %21 {strides = array<i32>} : memref<16x128xf32, #tpu.memory_space<vmem>>, vector<16x128xf32>,
    %c0_12 = arith.constant 0 : index
    %c0_13 = arith.constant 0 : index
    %23 = vector.load %arg7[%c0_12, %c0_13] : memref<16x128xf32, #tpu.memory_space<vmem>>, vector<16x128xf32>
    %24 = arith.addf %23, %19 : vector<16x128xf32>
    %c0_14 = arith.constant 0 : index
    %c0_15 = arith.constant 0 : index
    %25 = vector.load %arg7[%c0_14, %c0_15] : memref<16x128xf32, #tpu.memory_space<vmem>>, vector<16x128xf32>
    tpu.vector_store %arg7[%c0_14, %c0_15], %24 {strides = array<i32>} : memref<16x128xf32, #tpu.memory_space<vmem>>, vector<16x128xf32>,
    %c0_16 = arith.constant 0 : index
    %c0_17 = arith.constant 0 : index
    %26 = vector.load %arg8[%c0_16, %c0_17] : memref<16x128xf32, #tpu.memory_space<vmem>>, vector<16x128xf32>
    %cst_18 = arith.constant 0.000000e+00 : f32
    %27 = vector.broadcast %cst_18 : f32 to vector<16x128xf32>
    %28 = arith.cmpf ogt, %19, %27 : vector<16x128xf32>
    %29 = arith.extui %28 : vector<16x128xi1> to vector<16x128xi32>
    %30 = arith.sitofp %29 : vector<16x128xi32> to vector<16x128xf32>
    %31 = arith.addf %26, %30 : vector<16x128xf32>
    %c0_19 = arith.constant 0 : index
    %c0_20 = arith.constant 0 : index
    %32 = vector.load %arg8[%c0_19, %c0_20] : memref<16x128xf32, #tpu.memory_space<vmem>>, vector<16x128xf32>
    tpu.vector_store %arg8[%c0_19, %c0_20], %31 {strides = array<i32>} : memref<16x128xf32, #tpu.memory_space<vmem>>, vector<16x128xf32>,
    %c0_i32_21 = arith.constant 0 : i32
    %33 = arith.cmpi eq, %arg1, %c0_i32_21 : i32
    %34 = arith.extui %33 : i1 to i32
    %c0_i32_22 = arith.constant 0 : i32
    %35 = arith.cmpi ne, %34, %c0_i32_22 : i32
    scf.if %35 {
      %c0_23 = arith.constant 0 : index
      %c0_24 = arith.constant 0 : index
      %36 = vector.load %arg6[%c0_23, %c0_24] : memref<16x128xf32, #tpu.memory_space<vmem>>, vector<16x128xf32>
      %cst_25 = arith.constant dense<0.000000e+00> : vector<128xf32>
      %37 = vector.multi_reduction <add>, %36, %cst_25 [0] : vector<16x128xf32> to vector<128xf32>
      %38 = vector.shape_cast %37 : vector<128xf32> to vector<1x128xf32>
      %c0_26 = arith.constant 0 : index
      %c0_27 = arith.constant 0 : index
      %c0_28 = arith.constant 0 : index
      %39 = vector.load %arg5[%c0_26, %c0_27, %c0_28] : memref<1x3x128xf32, #tpu.memory_space<vmem>>, vector<1x1x128xf32>
      %40 = vector.shape_cast %39 : vector<1x1x128xf32> to vector<1x128xf32>
      %41 = vector.shape_cast %38 : vector<1x128xf32> to vector<1x1x128xf32>
      tpu.vector_store %arg5[%c0_26, %c0_27, %c0_28], %41 {strides = array<i32>} : memref<1x3x128xf32, #tpu.memory_space<vmem>>, vector<1x1x128xf32>,
      %c0_29 = arith.constant 0 : index
      %c0_30 = arith.constant 0 : index
      %42 = vector.load %arg7[%c0_29, %c0_30] : memref<16x128xf32, #tpu.memory_space<vmem>>, vector<16x128xf32>
      %cst_31 = arith.constant dense<0.000000e+00> : vector<128xf32>
      %43 = vector.multi_reduction <add>, %42, %cst_31 [0] : vector<16x128xf32> to vector<128xf32>
      %44 = vector.shape_cast %43 : vector<128xf32> to vector<1x128xf32>
      %c0_32 = arith.constant 0 : index
      %c1 = arith.constant 1 : index
      %c0_33 = arith.constant 0 : index
      %45 = vector.load %arg5[%c0_32, %c1, %c0_33] : memref<1x3x128xf32, #tpu.memory_space<vmem>>, vector<1x1x128xf32>
      %46 = vector.shape_cast %45 : vector<1x1x128xf32> to vector<1x128xf32>
      %47 = vector.shape_cast %44 : vector<1x128xf32> to vector<1x1x128xf32>
      tpu.vector_store %arg5[%c0_32, %c1, %c0_33], %47 {strides = array<i32>} : memref<1x3x128xf32, #tpu.memory_space<vmem>>, vector<1x1x128xf32>,
      %c0_34 = arith.constant 0 : index
      %c0_35 = arith.constant 0 : index
      %48 = vector.load %arg8[%c0_34, %c0_35] : memref<16x128xf32, #tpu.memory_space<vmem>>, vector<16x128xf32>
      %cst_36 = arith.constant dense<0.000000e+00> : vector<128xf32>
      %49 = vector.multi_reduction <add>, %48, %cst_36 [0] : vector<16x128xf32> to vector<128xf32>
      %50 = vector.shape_cast %49 : vector<128xf32> to vector<1x128xf32>
      %c0_37 = arith.constant 0 : index
      %c2 = arith.constant 2 : index
      %c0_38 = arith.constant 0 : index
      %51 = vector.load %arg5[%c0_37, %c2, %c0_38] : memref<1x3x128xf32, #tpu.memory_space<vmem>>, vector<1x1x128xf32>
      %52 = vector.shape_cast %51 : vector<1x1x128xf32> to vector<1x128xf32>
      %53 = vector.shape_cast %50 : vector<1x128xf32> to vector<1x1x128xf32>
      tpu.vector_store %arg5[%c0_37, %c2, %c0_38], %53 {strides = array<i32>} : memref<1x3x128xf32, #tpu.memory_space<vmem>>, vector<1x1x128xf32>,
    } else {
    }
    return
  }
  func.func @transform_0(%arg0: i32, %arg1: i32) -> (i32, i32) {
    %c1_i32 = arith.constant 1 : i32
    %0 = arith.muli %arg0, %c1_i32 : i32
    %1 = arith.addi %0, %arg1 : i32
    %c0_i32 = arith.constant 0 : i32
    %2 = arith.minsi %1, %c0_i32 : i32
    %c0_i32_0 = arith.constant 0 : i32
    %c0_i32_1 = arith.constant 0 : i32
    return %2, %c0_i32_0 : i32, i32
  }
  func.func @transform_1(%arg0: i32, %arg1: i32) -> (i32, i32) {
    %c1_i32 = arith.constant 1 : i32
    %0 = arith.muli %arg0, %c1_i32 : i32
    %1 = arith.addi %0, %arg1 : i32
    %c0_i32 = arith.constant 0 : i32
    %2 = arith.minsi %1, %c0_i32 : i32
    %c0_i32_0 = arith.constant 0 : i32
    %c0_i32_1 = arith.constant 0 : i32
    return %2, %c0_i32_0 : i32, i32
  }
  func.func @transform_2(%arg0: i32, %arg1: i32) -> (i32, i32) {
    %c1_i32 = arith.constant 1 : i32
    %0 = arith.muli %arg0, %c1_i32 : i32
    %1 = arith.addi %0, %arg1 : i32
    %c0_i32 = arith.constant 0 : i32
    %2 = arith.minsi %1, %c0_i32 : i32
    %c0_i32_0 = arith.constant 0 : i32
    %c0_i32_1 = arith.constant 0 : i32
    return %2, %c0_i32_0 : i32, i32
  }
  func.func @transform_3(%arg0: i32, %arg1: i32) -> (i32, i32, i32) {
    %c0_i32 = arith.constant 0 : i32
    %c0_i32_0 = arith.constant 0 : i32
    %c0_i32_1 = arith.constant 0 : i32
    return %arg0, %c0_i32, %c0_i32_0 : i32, i32, i32
  }
}

</mosaic_0001>

<llo_original>
// kernel: tpu_custom_call.1
$region0: #{tpu_custom_call.1}
  #allocation0 [shape = 'u32[]', space=smem, size = 0x4, offset = 0x4, fixed_abs, tag = 'smem constant byte address 0x4 - core index']
  #allocation1 [shape = 'u32[144,128]{1,0:T(1,128)}', space=vmem, size = 0x12000, scoped, tag = 'internal scratch']
  #allocation2 [shape = 'f32[16,128]{1,0:T(8,128)}', space=vmem, size = 0x2000, scoped, tag = 'scratch operand']
  #allocation3 [shape = 'f32[16,128]{1,0:T(8,128)}', space=vmem, size = 0x2000, scoped, tag = 'scratch operand']
  #allocation4 [shape = 'f32[16,128]{1,0:T(8,128)}', space=vmem, size = 0x2000, scoped, tag = 'scratch operand']
  %s0 = inlined_call_operand.hbm [shape: f32[16,128], index: 0, kind: input, shape index: {}]
  %s1 = inlined_call_operand.hbm [shape: f32[16,128], index: 1, kind: input, shape index: {}]
  %s2 = inlined_call_operand.hbm [shape: f32[16,128], index: 2, kind: input, shape index: {}]
  %s3 = inlined_call_operand.vmem [shape: f32[2,3,128], index: 3, kind: output, shape index: {}]
  %s4 = sld [smem:[#allocation0]]
  $region65: #{tpu_custom_call.1} parent=0
    _
  %s6 = ssub.s32 1, %s4
  %s7 = scalar_select 0, %s6, %s4
  $region1: #{tpu_custom_call.1} parent=0
    #allocation5 [shape = 'u8[16384]{0}', space=vmem, size = 0x4000, scoped, tag = 'input window, operand 0']
    #allocation6 [shape = 's32[2]{0}', space=sflag, size = 0x8, scoped, tag = 'scoped memory for tpu_custom_call.1']
    #allocation7 [shape = 'u8[16384]{0}', space=vmem, size = 0x4000, scoped, tag = 'input window, operand 1']
    #allocation8 [shape = 's32[2]{0}', space=sflag, size = 0x8, scoped, tag = 'scoped memory for tpu_custom_call.1']
    #allocation9 [shape = 'u8[16384]{0}', space=vmem, size = 0x4000, scoped, tag = 'input window, operand 2']
    %8 = vsyncpa [#allocation6], 0
    %s9 = scalar_lea.sflag [#allocation6], 1
    %10 = vsyncpa %s9, 0
    %11 = vsyncpa [#allocation8], 0
    %s12 = scalar_lea.sflag [#allocation8], 1
    %13 = vsyncpa %s12, 0
    loop: start=0, step=1, limit=4
    $region2: #{tpu_custom_call.1} parent=1 // loop_pre_header
      _
    $region3: #{tpu_custom_call.1} parent=1 // loop_header
      %s15 = sphi 0, %s19
      %p16 = scmp.ge.s32.totalorder %s15, 4
      %s22 = sphi 0, %s34
      %s23 = sphi 0, %s30
      %s24 = sphi 0, %s22
      %s25 = sphi 0, %s23
      %s26 = sphi 0, %s24
      %s27 = sphi 0, %s25
      %s43 = sphi 0, %s45
      %s46 = sphi 0, %s43
      %s47 = sphi 0, %s46
      %s63 = sphi 0, %s47
      %s75 = sphi 0, %s77
      %s78 = sphi 0, %s75
      %s79 = sphi 0, %s78
      %s95 = sphi 0, %s79
      %s107 = sphi 0, %s109
      %s110 = sphi 0, %s107
      %s111 = sphi 0, %s110
      %s127 = sphi 0, %s111
      %s133 = sphi 0, %s135
      %s136 = sphi 0, %s133
      %s137 = sphi 0, %s136
      %s153 = sphi 0, %s137
    $region4: #{tpu_custom_call.1} parent=1 // loop_header_branch
      %18 = sbr.rel (%p16) target = $region8
    $region5: #{tpu_custom_call.1} parent=1 // loop_body
      %s20 = ssub.s32 %s15, 1
      %s21 = ssub.s32 %s15, 2
      %s28 = sadd.s32 1, %s23
      %p29 = scmp.ge.s32.totalorder %s28, 1
      %s30 = scalar_select %p29, 0, %s28
      %s31 = sadd.s32 1, %s22
      %s32 = scalar_select %p29, %s31, %s22
      %p33 = scmp.ge.s32.totalorder %s32, 2
      %s34 = scalar_select %p33, 0, %s32
      %s35 = sadd.s32 %s22, %s23
      %p36 = scmp.lt.s32.totalorder %s35, 0
      %s37 = scalar_select %p36, %s35, 0
      %s38 = sadd.s32 %s34, %s30
      %p39 = scmp.lt.s32.totalorder %s38, 0
      %s40 = scalar_select %p39, %s38, 0
      %s41 = ssub.s32 %s37, %s40
      %p42 = scmp.eq.s32.totalorder %s41, 0
      %s44 = sadd.s32 %s43, 1
      %s45 = scalar_select %p42, %s43, %s44
      %p48 = pneg %p42
      %p49 = scmp.eq.s32.totalorder %s15, 1
      %p50 = por %p48, %p49
      %p51 = scmp.ne.s32.totalorder %s43, %s46
      %p52 = scmp.eq.s32.totalorder %s15, 0
      %p53 = por %p51, %p52
      %p54 = scmp.ne.s32.totalorder %s43, %s46
      %p55 = scmp.eq.s32.totalorder %s20, 1
      %p56 = por %p54, %p55
      %p57 = scmp.ne.s32.totalorder %s46, %s47
      %p58 = scmp.eq.s32.totalorder %s20, 0
      %p59 = por %p57, %p58
      %p60 = scmp.ne.s32.totalorder %s46, %s47
      %p61 = scmp.eq.s32.totalorder %s21, 1
      %p62 = por %p60, %p61
      %p64 = scmp.ne.s32.totalorder %s47, %s63
      %p65 = scmp.eq.s32.totalorder %s21, 0
      %p66 = por %p64, %p65
      %s67 = sadd.s32 %s22, %s23
      %p68 = scmp.lt.s32.totalorder %s67, 0
      %s69 = scalar_select %p68, %s67, 0
      %s70 = sadd.s32 %s34, %s30
      %p71 = scmp.lt.s32.totalorder %s70, 0
      %s72 = scalar_select %p71, %s70, 0
      %s73 = ssub.s32 %s69, %s72
      %p74 = scmp.eq.s32.totalorder %s73, 0
      %s76 = sadd.s32 %s75, 1
      %s77 = scalar_select %p74, %s75, %s76
      %p80 = pneg %p74
      %p81 = scmp.eq.s32.totalorder %s15, 1
      %p82 = por %p80, %p81
      %p83 = scmp.ne.s32.totalorder %s75, %s78
      %p84 = scmp.eq.s32.totalorder %s15, 0
      %p85 = por %p83, %p84
      %p86 = scmp.ne.s32.totalorder %s75, %s78
      %p87 = scmp.eq.s32.totalorder %s20, 1
      %p88 = por %p86, %p87
      %p89 = scmp.ne.s32.totalorder %s78, %s79
      %p90 = scmp.eq.s32.totalorder %s20, 0
      %p91 = por %p89, %p90
      %p92 = scmp.ne.s32.totalorder %s78, %s79
      %p93 = scmp.eq.s32.totalorder %s21, 1
      %p94 = por %p92, %p93
      %p96 = scmp.ne.s32.totalorder %s79, %s95
      %p97 = scmp.eq.s32.totalorder %s21, 0
      %p98 = por %p96, %p97
      %s99 = sadd.s32 %s22, %s23
      %p100 = scmp.lt.s32.totalorder %s99, 0
      %s101 = scalar_select %p100, %s99, 0
      %s102 = sadd.s32 %s34, %s30
      %p103 = scmp.lt.s32.totalorder %s102, 0
      %s104 = scalar_select %p103, %s102, 0
      %s105 = ssub.s32 %s101, %s104
      %p106 = scmp.eq.s32.totalorder %s105, 0
      %s108 = sadd.s32 %s107, 1
      %s109 = scalar_select %p106, %s107, %s108
      %p112 = pneg %p106
      %p113 = scmp.eq.s32.totalorder %s15, 1
      %p114 = por %p112, %p113
      %p115 = scmp.ne.s32.totalorder %s107, %s110
      %p116 = scmp.eq.s32.totalorder %s15, 0
      %p117 = por %p115, %p116
      %p118 = scmp.ne.s32.totalorder %s107, %s110
      %p119 = scmp.eq.s32.totalorder %s20, 1
      %p120 = por %p118, %p119
      %p121 = scmp.ne.s32.totalorder %s110, %s111
      %p122 = scmp.eq.s32.totalorder %s20, 0
      %p123 = por %p121, %p122
      %p124 = scmp.ne.s32.totalorder %s110, %s111
      %p125 = scmp.eq.s32.totalorder %s21, 1
      %p126 = por %p124, %p125
      %p128 = scmp.ne.s32.totalorder %s111, %s127
      %p129 = scmp.eq.s32.totalorder %s21, 0
      %p130 = por %p128, %p129
      %s131 = ssub.s32 %s22, %s34
      %p132 = scmp.eq.s32.totalorder %s131, 0
      %s134 = sadd.s32 %s133, 1
      %s135 = scalar_select %p132, %s133, %s134
      %p138 = pneg %p132
      %p139 = scmp.eq.s32.totalorder %s15, 1
      %p140 = por %p138, %p139
      %p141 = scmp.ne.s32.totalorder %s133, %s136
      %p142 = scmp.eq.s32.totalorder %s15, 0
      %p143 = por %p141, %p142
      %p144 = scmp.ne.s32.totalorder %s133, %s136
      %p145 = scmp.eq.s32.totalorder %s20, 1
      %p146 = por %p144, %p145
      %p147 = scmp.ne.s32.totalorder %s136, %s137
      %p148 = scmp.eq.s32.totalorder %s20, 0
      %p149 = por %p147, %p148
      %p150 = scmp.ne.s32.totalorder %s136, %s137
      %p151 = scmp.eq.s32.totalorder %s21, 1
      %p152 = por %p150, %p151
      %p154 = scmp.ne.s32.totalorder %s137, %s153
      %p155 = scmp.eq.s32.totalorder %s21, 0
      %p156 = por %p154, %p155
      %p157 = scmp.le.s32.totalorder 1, %s15
      %p158 = scmp.lt.s32.totalorder %s15, 3
      %p159 = pnand %p157, %p158
      %p160 = pneg %p159
      // Predicated region
      $region9: #{tpu_custom_call.1} parent=5 // pred_check
        _
      $region10: #{tpu_custom_call.1} parent=5 // pred_check_branch
        %162 = sbr.rel (%p159) target = $region12
      $region11: #{tpu_custom_call.1} parent=5 // pred_region
        %s163 = ssub.s32 %s15, 1
      $region12: #{tpu_custom_call.1} parent=5 // pred_fallthru
        _
      %p164 = scmp.lt.s32.totalorder %s15, 2
      // Predicated region
      $region13: #{tpu_custom_call.1} parent=5 // pred_check
        %p165 = pneg %p164
      $region14: #{tpu_custom_call.1} parent=5 // pred_check_branch
        %167 = sbr.rel (%p165) target = $region16
      $region15: #{tpu_custom_call.1} parent=5 // pred_region
        // Predicated region
        $region17: #{tpu_custom_call.1} parent=15 // pred_check
          %p168 = pneg %p53
        $region18: #{tpu_custom_call.1} parent=15 // pred_check_branch
          %170 = sbr.rel (%p168) target = $region20
        $region19: #{tpu_custom_call.1} parent=15 // pred_region
          %s171 = sand.u32 %s43, 1
          %s172 = scalar_lea.sflag [#allocation6], %s171
          %s173 = sand.u32 %s43, 1
          %s174 = smul.addr %s173, 16
          %s175 = scalar_lea.vmem [#allocation5], %s174
          %s176 = sadd.s32 %s22, %s23
          %p177 = scmp.lt.s32.totalorder %s176, 0
          %s178 = scalar_select %p177, %s176, 0
          %s179 = smul.u32 2, %s178
          %s181 = ssub.s32 256, 256
          %182 = vsyncadd %s172, %s181
          %s183 = smul.addr %s179, 128
          %s184 = scalar_lea.hbm %s0, %s183
          %s185 = sshll.u32 %s175, 4
          %s186 = int_to_ptr.vmem [resolvable:$true] %s185
          %191 = dma.hbm_to_vmem [thread:$0]  %s184, 256, %s186, %s172, 128, 128, 8
        $region20: #{tpu_custom_call.1} parent=15 // pred_fallthru
          _
        // Predicated region
        $region21: #{tpu_custom_call.1} parent=15 // pred_check
          %p192 = pneg %p85
        $region22: #{tpu_custom_call.1} parent=15 // pred_check_branch
          %194 = sbr.rel (%p192) target = $region24
        $region23: #{tpu_custom_call.1} parent=15 // pred_region
          %s195 = sand.u32 %s15, 1
          %s196 = scalar_lea.sflag [#allocation8], %s195
          %s197 = sand.u32 %s75, 1
          %s198 = smul.addr %s197, 16
          %s199 = scalar_lea.vmem [#allocation7], %s198
          %s200 = sadd.s32 %s22, %s23
          %p201 = scmp.lt.s32.totalorder %s200, 0
          %s202 = scalar_select %p201, %s200, 0
          %s203 = smul.u32 2, %s202
          %s205 = ssub.s32 256, 256
          %206 = vsyncadd %s196, %s205
          %s207 = smul.addr %s203, 128
          %s208 = scalar_lea.hbm %s1, %s207
          %s209 = sshll.u32 %s199, 4
          %s210 = int_to_ptr.vmem [resolvable:$true] %s209
          %215 = dma.hbm_to_vmem [thread:$0]  %s208, 256, %s210, %s196, 128, 128, 8
        $region24: #{tpu_custom_call.1} parent=15 // pred_fallthru
          _
        // Predicated region
        $region25: #{tpu_custom_call.1} parent=15 // pred_check
          %p216 = pneg %p117
        $region26: #{tpu_custom_call.1} parent=15 // pred_check_branch
          %218 = sbr.rel (%p216) target = $region28
        $region27: #{tpu_custom_call.1} parent=15 // pred_region
          %s219 = sand.u32 %s15, 1
          %s220 = scalar_lea.sflag [#allocation8], %s219
          %s221 = sand.u32 %s107, 1
          %s222 = smul.addr %s221, 16
          %s223 = scalar_lea.vmem [#allocation9], %s222
          %s224 = sadd.s32 %s22, %s23
          %p225 = scmp.lt.s32.totalorder %s224, 0
          %s226 = scalar_select %p225, %s224, 0
          %s227 = smul.u32 2, %s226
          %s229 = ssub.s32 256, 256
          %230 = vsyncadd %s220, %s229
          %s231 = smul.addr %s227, 128
          %s232 = scalar_lea.hbm %s2, %s231
          %s233 = sshll.u32 %s223, 4
          %s234 = int_to_ptr.vmem [resolvable:$true] %s233
          %239 = dma.hbm_to_vmem [thread:$0]  %s232, 256, %s234, %s220, 128, 128, 8
        $region28: #{tpu_custom_call.1} parent=15 // pred_fallthru
          _
      $region16: #{tpu_custom_call.1} parent=5 // pred_fallthru
        _
      %p240 = scmp.le.s32.totalorder 1, %s15
      %p241 = scmp.lt.s32.totalorder %s15, 3
      %p242 = pnand %p240, %p241
      %p243 = pneg %p242
      // Predicated region
      $region29: #{tpu_custom_call.1} parent=5 // pred_check
        _
      $region30: #{tpu_custom_call.1} parent=5 // pred_check_branch
        %245 = sbr.rel (%p242) target = $region32
      $region31: #{tpu_custom_call.1} parent=5 // pred_region
        %s246 = ssub.s32 %s15, 1
        %s247 = sand.u32 %s46, 1
        %s248 = scalar_lea.sflag [#allocation6], %s247
        %s249 = sand.u32 %s46, 1
        %s250 = smul.addr %s249, 16
        %s251 = scalar_lea.vmem [#allocation5], %s250
        // Predicated region
        $region33: #{tpu_custom_call.1} parent=31 // pred_check
          %p252 = pneg %p59
        $region34: #{tpu_custom_call.1} parent=31 // pred_check_branch
          %254 = sbr.rel (%p252) target = $region36
        $region35: #{tpu_custom_call.1} parent=31 // pred_region
          %255 = dma.done %s248, 256
        $region36: #{tpu_custom_call.1} parent=31 // pred_fallthru
          _
        %s256 = sand.u32 %s20, 1
        %s257 = scalar_lea.sflag [#allocation8], %s256
        %s258 = sand.u32 %s78, 1
        %s259 = smul.addr %s258, 16
        %s260 = scalar_lea.vmem [#allocation7], %s259
        // Predicated region
        $region37: #{tpu_custom_call.1} parent=31 // pred_check
          %p261 = pneg %p91
        $region38: #{tpu_custom_call.1} parent=31 // pred_check_branch
          %263 = sbr.rel (%p261) target = $region40
        $region39: #{tpu_custom_call.1} parent=31 // pred_region
          %264 = dma.done %s257, 256
        $region40: #{tpu_custom_call.1} parent=31 // pred_fallthru
          _
        %s265 = sand.u32 %s20, 1
        %s266 = scalar_lea.sflag [#allocation8], %s265
        %s267 = sand.u32 %s110, 1
        %s268 = smul.addr %s267, 16
        %s269 = scalar_lea.vmem [#allocation9], %s268
        // Predicated region
        $region41: #{tpu_custom_call.1} parent=31 // pred_check
          %p270 = pneg %p123
        $region42: #{tpu_custom_call.1} parent=31 // pred_check_branch
          %272 = sbr.rel (%p270) target = $region44
        $region43: #{tpu_custom_call.1} parent=31 // pred_region
          %273 = dma.done %s266, 256
        $region44: #{tpu_custom_call.1} parent=31 // pred_fallthru
          _
        %s274 = sand.u32 %s46, 1
        %s275 = scalar_lea.sflag [#allocation6], %s274
        %s276 = sand.u32 %s46, 1
        %s277 = smul.addr %s276, 16
        %s278 = scalar_lea.vmem [#allocation5], %s277
        %p279 = pneg %p59
        %p280 = pneg %p56
        %s281 = sand.u32 %s20, 1
        %s282 = scalar_lea.sflag [#allocation8], %s281
        %s283 = sand.u32 %s78, 1
        %s284 = smul.addr %s283, 16
        %s285 = scalar_lea.vmem [#allocation7], %s284
        %p286 = pneg %p91
        %p287 = pneg %p88
        %s288 = sand.u32 %s20, 1
        %s289 = scalar_lea.sflag [#allocation8], %s288
        %s290 = sand.u32 %s110, 1
        %s291 = smul.addr %s290, 16
        %s292 = scalar_lea.vmem [#allocation9], %s291
        %p293 = pneg %p123
        %p294 = pneg %p120
        %p295 = pneg %p149
        %p296 = pneg %p146
        %p297 = scmp.lt.s32.totalorder %s24, 1
        %s298 = scalar_select %p297, %s24, 1
        %s299 = smul.addr %s298, 4
        %s300 = scalar_lea.vmem %s3, %s299
        %s301 = sadd.s32 %s24, %s25
        %p302 = scmp.lt.s32.totalorder %s301, 0
        %s303 = scalar_select %p302, %s301, 0
        %s304 = smul.u32 2, %s303
        %s305 = sadd.s32 %s24, %s25
        %p306 = scmp.lt.s32.totalorder %s305, 0
        %s307 = scalar_select %p306, %s305, 0
        %s308 = smul.u32 2, %s307
        %s309 = sadd.s32 %s24, %s25
        %p310 = scmp.lt.s32.totalorder %s309, 0
        %s311 = scalar_select %p310, %s309, 0
        %s312 = smul.u32 2, %s311
        %p313 = scmp.lt.s32.totalorder %s24, 1
        %s314 = scalar_select %p313, %s24, 1
        %s315 = smul.addr %s314, 4
        %s316 = scalar_lea.vmem %s3, %s315
        %p317 = scmp.eq.s32.totalorder %s25, 0
        // Predicated region
        $region45: #{tpu_custom_call.1} parent=31 // pred_check
          %p318 = pneg %p317
        $region46: #{tpu_custom_call.1} parent=31 // pred_check_branch
          %320 = sbr.rel (%p318) target = $region48
        $region47: #{tpu_custom_call.1} parent=31 // pred_region
          %321 = vst [vmem:[#allocation2] sm:$0xff] 0.0
          %322 = vst [vmem:[#allocation2 + $0x8] sm:$0xff] 0.0
          %323 = vst [vmem:[#allocation3] sm:$0xff] 0.0
          %324 = vst [vmem:[#allocation3 + $0x8] sm:$0xff] 0.0
          %325 = vst [vmem:[#allocation4] sm:$0xff] 0.0
          %326 = vst [vmem:[#allocation4 + $0x8] sm:$0xff] 0.0
        $region48: #{tpu_custom_call.1} parent=31 // pred_fallthru
          _
        %v327 = vld [vmem:[%s251] sm:$0xff]
        %v328 = vld [vmem:[%s251 + $0x8] sm:$0xff]
        %v329 = vld [vmem:[%s260] sm:$0xff]
        %v330 = vld [vmem:[%s260 + $0x8] sm:$0xff]
        %v331 = vld [vmem:[%s269] sm:$0xff]
        %v332 = vld [vmem:[%s269 + $0x8] sm:$0xff]
        %v333 = vsub.f32 %v327, %v329
        %v334 = vsub.f32 %v328, %v330
        %v335 = vmul.f32 %v333, %v333
        %v336 = vmul.f32 %v334, %v334
        %s337 = sadd.s32 %s24, %s25
        %s338 = smul.u32 %s337, 16
        %v339 = vlaneseq
        %v340 = vshrl.u32 %v339, 7
        %v341 = vadd.s32 %v340, 8
        %v342 = vstv %s338
        %v343 = vadd.s32 %v342, %v340
        %v344 = vadd.s32 %v342, %v341
        %vm345 = vcmp.lt.s32.totalorder %v343, 16
        %vm346 = vcmp.lt.s32.totalorder %v344, 16
        %v347 = vsel %vm345, %v335, 0.0
        %v348 = vsel %vm346, %v336, 0.0
        %v349 = vsel %vm345, %v331, 0.0
        %v350 = vsel %vm346, %v332, 0.0
        %v351 = vld [vmem:[#allocation2] sm:$0xff]
        %v352 = vld [vmem:[#allocation2 + $0x8] sm:$0xff]
        %v353 = vadd.f32 %v351, %v347
        %v354 = vadd.f32 %v352, %v348
        %355 = vst [vmem:[#allocation2] sm:$0xff] %v353
        %356 = vst [vmem:[#allocation2 + $0x8] sm:$0xff] %v354
        %v357 = vld [vmem:[#allocation3] sm:$0xff]
        %v358 = vld [vmem:[#allocation3 + $0x8] sm:$0xff]
        %v359 = vadd.f32 %v357, %v349
        %v360 = vadd.f32 %v358, %v350
        %361 = vst [vmem:[#allocation3] sm:$0xff] %v359
        %362 = vst [vmem:[#allocation3 + $0x8] sm:$0xff] %v360
        %v363 = vld [vmem:[#allocation4] sm:$0xff]
        %v364 = vld [vmem:[#allocation4 + $0x8] sm:$0xff]
        %vm365 = vcmp.gt.f32.partialorder %v349, 0.0
        %vm366 = vcmp.gt.f32.partialorder %v350, 0.0
        %v367 = vsel %vm365, 1, 0
        %v368 = vsel %vm366, 1, 0
        %v369 = vcvt.s32.f32 %v367
        %v370 = vcvt.s32.f32 %v368
        %v371 = vadd.f32 %v363, %v369
        %v372 = vadd.f32 %v364, %v370
        %373 = vst [vmem:[#allocation4] sm:$0xff] %v371
        %374 = vst [vmem:[#allocation4 + $0x8] sm:$0xff] %v372
        // Predicated region
        $region49: #{tpu_custom_call.1} parent=31 // pred_check
          %p375 = pneg %p317
        $region50: #{tpu_custom_call.1} parent=31 // pred_check_branch
          %377 = sbr.rel (%p375) target = $region52
        $region51: #{tpu_custom_call.1} parent=31 // pred_region
          %v378 = vld [vmem:[#allocation2] sm:$0xff]
          %v379 = vld [vmem:[#allocation2 + $0x8] sm:$0xff]
          %v380 = vadd.f32 %v378, %v379
          %v381 = vrot.slane %v380, 4
          %v382 = vadd.f32 %v380, %v381
          %v383 = vrot.slane %v382, 2
          %v384 = vadd.f32 %v382, %v383
          %v385 = vrot.slane %v384, 1
          %v386 = vadd.f32 %v384, %v385
          %387 = vst [vmem:[%s316] sm:$0x1] %v386
          %v388 = vld [vmem:[#allocation3] sm:$0xff]
          %v389 = vld [vmem:[#allocation3 + $0x8] sm:$0xff]
          %v390 = vadd.f32 %v388, %v389
          %v391 = vrot.slane %v390, 4
          %v392 = vadd.f32 %v390, %v391
          %v393 = vrot.slane %v392, 2
          %v394 = vadd.f32 %v392, %v393
          %v395 = vrot.slane %v394, 1
          %v396 = vadd.f32 %v394, %v395
          %397 = vst [vmem:[%s316 + $0x1] sm:$0x1] %v396
          %v398 = vld [vmem:[#allocation4] sm:$0xff]
          %v399 = vld [vmem:[#allocation4 + $0x8] sm:$0xff]
          %v400 = vadd.f32 %v398, %v399
          %v401 = vrot.slane %v400, 4
          %v402 = vadd.f32 %v400, %v401
          %v403 = vrot.slane %v402, 2
          %v404 = vadd.f32 %v402, %v403
          %v405 = vrot.slane %v404, 1
          %v406 = vadd.f32 %v404, %v405
          %407 = vst [vmem:[%s316 + $0x2] sm:$0x1] %v406
        $region52: #{tpu_custom_call.1} parent=31 // pred_fallthru
          _
        %p408 = scmp.lt.s32.totalorder %s24, 1
        %s409 = scalar_select %p408, %s24, 1
        %s410 = smul.addr %s409, 4
        %s411 = scalar_lea.vmem %s3, %s410
        // Predicated region
        $region53: #{tpu_custom_call.1} parent=31 // pred_check
          %p412 = pneg %p146
        $region54: #{tpu_custom_call.1} parent=31 // pred_check_branch
          %414 = sbr.rel (%p412) target = $region56
        $region55: #{tpu_custom_call.1} parent=31 // pred_region
          _
        $region56: #{tpu_custom_call.1} parent=31 // pred_fallthru
          _
      $region32: #{tpu_custom_call.1} parent=5 // pred_fallthru
        _
      %p415 = scmp.le.s32.totalorder 2, %s15
      // Predicated region
      $region57: #{tpu_custom_call.1} parent=5 // pred_check
        %p416 = pneg %p415
      $region58: #{tpu_custom_call.1} parent=5 // pred_check_branch
        %418 = sbr.rel (%p416) target = $region60
      $region59: #{tpu_custom_call.1} parent=5 // pred_region
        %s419 = ssub.s32 %s15, 2
        // Predicated region
        $region61: #{tpu_custom_call.1} parent=59 // pred_check
          %p420 = pneg %p152
        $region62: #{tpu_custom_call.1} parent=59 // pred_check_branch
          %422 = sbr.rel (%p420) target = $region64
        $region63: #{tpu_custom_call.1} parent=59 // pred_region
          %p423 = scmp.lt.s32.totalorder %s26, 1
          %s424 = scalar_select %p423, %s26, 1
          %s425 = smul.addr %s424, 4
          %s426 = scalar_lea.vmem %s3, %s425
        $region64: #{tpu_custom_call.1} parent=59 // pred_fallthru
          _
      $region60: #{tpu_custom_call.1} parent=5 // pred_fallthru
        _
    $region6: #{tpu_custom_call.1} parent=1 // loop_footer
      %s19 = sadd.s32 1, %s15
    $region7: #{tpu_custom_call.1} parent=1 // loop_footer_branch
      %14 = sbr.rel target = $region3
    $region8: #{tpu_custom_call.1} parent=1 // loop_exit
      _
    %427 = vsyncpa [#allocation6], 1
    %s428 = scalar_lea.sflag [#allocation6], 1
    %429 = vsyncpa %s428, 1
    %430 = vsyncpa [#allocation8], 1
    %s431 = scalar_lea.sflag [#allocation8], 1
    %432 = vsyncpa %s431, 1

</llo_original>
